<compile_context>
chip_gen: v7x
topology: tpu7x:2x2x1
jax: 0.10.0
libtpu: 0.0.40
codegen_flags: <defaults>
</compile_context>

<pallas_src>
import jax
import jax.numpy as jnp
from jax.experimental import pallas as pl
from jax.experimental.pallas import tpu as pltpu


_VMEM_LIMIT_BYTES = 32 * 1024 * 1024   # >= v5e default scoped VMEM, == v6e/v7x
_VMEM_BUDGET_BYTES = 12 * 1024 * 1024  # tile-selection budget (double-buffers incl.)


def _round_up(x, m):
    return ((x + m - 1) // m) * m


def _pick_mxu_rows_tile(rows, pref=256):
    """Row tile for the fused matmul: multiple of 8, prefer `pref` (fills the
    256-wide MXU on v6e/v7x), prefer a tile that divides rows (no pad) and
    leaves >= 2 grid steps (v7x dual TensorCore)."""
    rows8 = _round_up(rows, 8)
    divisors = [c for c in (8, 16, 32, 64, 128, 256, 512, 1024)
                if c <= rows8 and rows8 % c == 0]
    good = [c for c in divisors if c <= pref and rows8 // c >= 2]
    if good:
        return good[-1], rows8
    ok = [c for c in divisors if c <= pref]
    if ok:
        return ok[-1], rows8
    if divisors:
        return divisors[0], rows8
    bm = min(pref, rows8)
    return bm, _round_up(rows8, bm)


def _pick_add_tile(rows, d, itemsize):
    """Row tile for the bandwidth-bound add: aim for >= 1 MiB per block
    (~85% of HBM roofline vs ~63% at 256 KiB), cap ~4 MiB, prefer a tile that
    divides rows (avoids whole-array pads) and leaves >= 2 grid steps."""
    rows8 = _round_up(rows, 8)
    row_bytes = max(1, d * itemsize)
    want = _round_up(max(8, -(-(1 << 20) // row_bytes)), 8)
    cap = max(want, (4 << 20) // row_bytes)
    divisors = [c for c in (8, 16, 32, 64, 128, 256, 512, 1024, 2048, 4096, 8192)
                if c <= rows8 and rows8 % c == 0]
    for c in divisors:                    # smallest divisor meeting the target
        if want <= c <= cap:
            return c, rows8
    small = [c for c in divisors if c < rows8]
    if small:
        return small[-1], rows8           # biggest tile that still gives >= 2 steps
    if divisors:
        return divisors[-1], rows8        # tiny input: single block
    bm = min(want, rows8)
    return bm, _round_up(rows8, bm)


# ---------------------------------------------------------------------------
# Fused Residual(Linear):  o = x @ W + x
# ---------------------------------------------------------------------------
def _residual_linear_wfull_kernel(x_ref, w_ref, o_ref):
    # x_ref: (bm, d) bf16 row tile; w_ref: (d, d) bf16 weight (VMEM-resident);
    # o_ref: (bm, d) f32.  Residual comes from the already-loaded x tile.
    fx = jnp.dot(x_ref[...], w_ref[...], preferred_element_type=jnp.float32)
    o_ref[...] = (fx + x_ref[...].astype(jnp.float32)).astype(o_ref.dtype)


def _make_residual_linear_tiled_kernel(tn):
    def kernel(x_ref, w_ref, o_ref):
        # x_ref: (bm, d) bf16 full-K row tile; w_ref: (d, tn) bf16 column tile.
        j = pl.program_id(0)                       # weight column-tile index (outer)
        fx = jnp.dot(x_ref[...], w_ref[...], preferred_element_type=jnp.float32)
        col = pl.multiple_of(j * tn, 128)          # tn is a multiple of 128
        res = x_ref[:, pl.ds(col, tn)].astype(jnp.float32)
        o_ref[...] = (fx + res).astype(o_ref.dtype)
    return kernel


def _pick_tiled_sizes(rows_p, d, bm_pref):
    """Pick (bm, tn) so the double-buffered working set fits the VMEM budget."""
    def vmem_est(bm, tn):
        # x row tile (bf16, 2 bufs) + weight tile (bf16, 2 bufs) + out (f32, 2 bufs)
        return 2 * bm * d * 2 + 2 * d * tn * 2 + 2 * bm * tn * 4
    bms = [c for c in (bm_pref, 128, 64, 32, 16, 8)
           if c <= bm_pref and rows_p % c == 0]
    for bm in bms:
        for tn in (512, 256, 128):
            if d % tn == 0 and vmem_est(bm, tn) <= _VMEM_BUDGET_BYTES:
                return bm, tn
    return (bms[-1] if bms else 8), 128


def residual_linear(x, w, *, block_rows=256, max_resident_w_bytes=4 * 1024 * 1024):
    """Pallas implementation of Residual(Linear): (x @ w) + x.

    x: [batch, seq, dim] float32;  w: [dim, dim] float32.
    """
    b, n, d = x.shape
    assert w.shape == (d, d)
    rows = b * n
    x2 = x.reshape(rows, d)

    bm, rows_p = _pick_mxu_rows_tile(rows, block_rows)
    if rows_p != rows:
        x2 = jnp.pad(x2, ((0, rows_p - rows), (0, 0)))

    # bf16 into the MXU (native path on v5e/v6e/v7x, halves input HBM traffic);
    # accumulation and the residual add stay in f32 inside the kernel.
    xb = x2.astype(jnp.bfloat16)
    wb = w.astype(jnp.bfloat16)

    flops = 2 * rows_p * d * d
    w_bytes = d * d * 2

    if d % 128 != 0 or w_bytes <= max_resident_w_bytes:
        # Whole (bf16) weight resident in VMEM: x is streamed exactly once.
        # TODO(synk): for very large non-128-aligned d, pad d to 128 and/or add a
        # K-reduction grid axis (f32 accumulator + pl.when init/finalize).
        bytes_acc = rows_p * d * 2 + w_bytes + rows_p * d * 4
        out2 = pl.pallas_call(
            _residual_linear_wfull_kernel,
            out_shape=jax.ShapeDtypeStruct((rows_p, d), x.dtype),
            grid_spec=pltpu.PrefetchScalarGridSpec(
                num_scalar_prefetch=0,
                grid=(rows_p // bm,),
                in_specs=[
                    pl.BlockSpec((bm, d), lambda i: (i, 0)),   # x row tile (full K)
                    pl.BlockSpec((d, d), lambda i: (0, 0)),    # weight, resident
                ],
                out_specs=pl.BlockSpec((bm, d), lambda i: (i, 0)),
            ),
            compiler_params=pltpu.CompilerParams(
                dimension_semantics=("parallel",),
                vmem_limit_bytes=_VMEM_LIMIT_BYTES,
            ),
            cost_estimate=pl.CostEstimate(
                flops=flops, transcendentals=0, bytes_accessed=bytes_acc),
        )(xb, wb)
    else:
        # Weight too big for residency: tile its N dim on the OUTER grid axis so
        # each column tile is fetched once and reused across all row tiles.
        bm, tn = _pick_tiled_sizes(rows_p, d, bm)
        bytes_acc = (d // tn) * rows_p * d * 2 + w_bytes + rows_p * d * 4
        out2 = pl.pallas_call(
            _make_residual_linear_tiled_kernel(tn),
            out_shape=jax.ShapeDtypeStruct((rows_p, d), x.dtype),
            grid_spec=pltpu.PrefetchScalarGridSpec(
                num_scalar_prefetch=0,
                grid=(d // tn, rows_p // bm),
                in_specs=[
                    pl.BlockSpec((bm, d), lambda j, i: (i, 0)),  # x row tile (full K)
                    pl.BlockSpec((d, tn), lambda j, i: (0, j)),  # weight column tile
                ],
                out_specs=pl.BlockSpec((bm, tn), lambda j, i: (i, j)),
            ),
            compiler_params=pltpu.CompilerParams(
                dimension_semantics=("parallel", "parallel"),
                vmem_limit_bytes=_VMEM_LIMIT_BYTES,
            ),
            cost_estimate=pl.CostEstimate(
                flops=flops, transcendentals=0, bytes_accessed=bytes_acc),
        )(xb, wb)

    # NOTE: no input_output_aliases here — x columns are still needed as the
    # matmul K input for later N tiles under the tiled grid order.
    return out2[:rows].reshape(b, n, d)


# ---------------------------------------------------------------------------
# Generic Residual: fn computed outside, the add done in a Pallas kernel.
# ---------------------------------------------------------------------------
def _residual_add_kernel(fx_ref, x_ref, o_ref):
    o_ref[...] = fx_ref[...] + x_ref[...]


def residual(fn, x):
    """Residual(fn)(x) = fn(x) + x, with the add done in a Pallas kernel."""
    fx = fn(x)
    assert fx.shape == x.shape and fx.dtype == x.dtype
    b, n, d = x.shape
    rows = b * n
    fx2 = fx.reshape(rows, d)
    x2 = x.reshape(rows, d)

    bm, rows_p = _pick_add_tile(rows, d, x.dtype.itemsize)
    if rows_p != rows:
        pad = ((0, rows_p - rows), (0, 0))
        fx2 = jnp.pad(fx2, pad)
        x2 = jnp.pad(x2, pad)

    out2 = pl.pallas_call(
        _residual_add_kernel,
        out_shape=jax.ShapeDtypeStruct((rows_p, d), x.dtype),
        grid_spec=pltpu.PrefetchScalarGridSpec(
            num_scalar_prefetch=0,
            grid=(rows_p // bm,),
            in_specs=[
                pl.BlockSpec((bm, d), lambda i: (i, 0)),
                pl.BlockSpec((bm, d), lambda i: (i, 0)),
            ],
            out_specs=pl.BlockSpec((bm, d), lambda i: (i, 0)),
        ),
        compiler_params=pltpu.CompilerParams(
            dimension_semantics=("parallel",),
            vmem_limit_bytes=_VMEM_LIMIT_BYTES,
        ),
        input_output_aliases={0: 0},  # reuse the fn(x) buffer for the output
        cost_estimate=pl.CostEstimate(
            flops=rows_p * d, transcendentals=0,
            bytes_accessed=3 * rows_p * d * x.dtype.itemsize),
    )(fx2, x2)

    return out2[:rows].reshape(b, n, d)


if __name__ == "__main__":
    key = jax.random.PRNGKey(0)
    kx, kw = jax.random.split(key)

    # Small but TPU-friendly shapes: rows = 4*128 = 512, dim lane-aligned (128).
    batch, seq, dim = 4, 128, 128
    x = jax.random.normal(kx, (batch, seq, dim), dtype=jnp.float32)
    w = jax.random.normal(kw, (dim, dim), dtype=jnp.float32) / jnp.sqrt(dim)

    # Fused kernel: Residual(Linear) — weight-resident path.
    out_fused = jax.block_until_ready(residual_linear(x, w))
    # Fused kernel: force the column-tiled (large-d) path so it is also tested.
    out_tiled = jax.block_until_ready(residual_linear(x, w, max_resident_w_bytes=0))

    # Generic residual kernel with the same fn applied outside the kernel.
    out_generic = jax.block_until_ready(
        residual(lambda t: jnp.einsum("bnd,de->bne", t, w), x)
    )

    ref = jnp.einsum("bnd,de->bne", x, w,
                     precision=jax.lax.Precision.HIGHEST) + x
    for o in (out_fused, out_tiled, out_generic):
        assert o.shape == x.shape and o.dtype == x.dtype
    # Fused kernels feed the MXU in bf16 (inputs rounded to bf16): wider tol.
    assert jnp.allclose(out_fused, ref, atol=5e-2, rtol=5e-2)
    assert jnp.allclose(out_tiled, ref, atol=5e-2, rtol=5e-2)
    # Generic path adds in f32 (fn runs at default matmul precision).
    assert jnp.allclose(out_generic, ref, atol=1e-2, rtol=1e-2)

    print("KERNEL_OK")
</pallas_src>

<mosaic_0001>
module attributes {stable_mosaic.version = 11 : i64} {
  func.func @_residual_linear_wfull_kernel(%arg0: i32, %arg1: memref<256x128xbf16, #tpu.memory_space<vmem>>, %arg2: memref<128x128xbf16, #tpu.memory_space<vmem>>, %arg3: memref<256x128xf32, #tpu.memory_space<vmem>>) attributes {dimension_semantics = [#tpu.dimension_semantics<parallel>], iteration_bounds = array<i64: 2>, scalar_prefetch = 0 : i64, scratch_operands = 0 : i64, tpu.core_type = #tpu.core_type<tc>, window_params = [{transform_indices = @transform_0, window_bounds = array<i64: 256, 128>}, {pipeline_mode = #tpu.pipeline_mode<synchronous>, transform_indices = @transform_1, window_bounds = array<i64: 128, 128>}, {transform_indices = @transform_2, window_bounds = array<i64: 256, 128>}]} {
    %c0 = arith.constant 0 : index
    %c0_0 = arith.constant 0 : index
    %0 = vector.load %arg1[%c0, %c0_0] : memref<256x128xbf16, #tpu.memory_space<vmem>>, vector<256x128xbf16>
    %c0_1 = arith.constant 0 : index
    %c0_2 = arith.constant 0 : index
    %1 = vector.load %arg2[%c0_1, %c0_2] : memref<128x128xbf16, #tpu.memory_space<vmem>>, vector<128x128xbf16>
    %cst = arith.constant dense<0.000000e+00> : vector<256x128xf32>
    %2 = tpu.matmul %0, %1, %cst {dimension_numbers = #tpu.dot_dimension_numbers<[1], [0], [0], [1], [0, 0, 1, 1], [], []>} : vector<256x128xbf16>, vector<128x128xbf16>, vector<256x128xf32> -> vector<256x128xf32>
    %c0_3 = arith.constant 0 : index
    %c0_4 = arith.constant 0 : index
    %3 = vector.load %arg1[%c0_3, %c0_4] : memref<256x128xbf16, #tpu.memory_space<vmem>>, vector<256x128xbf16>
    %4 = arith.extf %3 : vector<256x128xbf16> to vector<256x128xf32>
    %5 = arith.addf %2, %4 : vector<256x128xf32>
    %c0_5 = arith.constant 0 : index
    %c0_6 = arith.constant 0 : index
    %6 = vector.load %arg3[%c0_5, %c0_6] : memref<256x128xf32, #tpu.memory_space<vmem>>, vector<256x128xf32>
    tpu.vector_store %arg3[%c0_5, %c0_6], %5 {strides = array<i32>} : memref<256x128xf32, #tpu.memory_space<vmem>>, vector<256x128xf32>,
    return
  }
  func.func @transform_0(%arg0: i32) -> (i32, i32) {
    %c0_i32 = arith.constant 0 : i32
    %c0_i32_0 = arith.constant 0 : i32
    return %arg0, %c0_i32 : i32, i32
  }
  func.func @transform_1(%arg0: i32) -> (i32, i32) {
    %c0_i32 = arith.constant 0 : i32
    %c0_i32_0 = arith.constant 0 : i32
    %c0_i32_1 = arith.constant 0 : i32
    return %c0_i32, %c0_i32_0 : i32, i32
  }
  func.func @transform_2(%arg0: i32) -> (i32, i32) {
    %c0_i32 = arith.constant 0 : i32
    %c0_i32_0 = arith.constant 0 : i32
    return %arg0, %c0_i32 : i32, i32
  }
}

</mosaic_0001>

<llo_original>
// kernel: tpu_custom_call.1
$region0: #{tpu_custom_call.1}
  #allocation0 [shape = 'u32[]', space=smem, size = 0x4, offset = 0x4, fixed_abs, tag = 'smem constant byte address 0x4 - core index']
  #allocation1 [shape = 'u32[144,128]{1,0:T(1,128)}', space=vmem, size = 0x12000, scoped, tag = 'internal scratch']
  %s0 = inlined_call_operand.hbm [shape: bf16[512,128], index: 0, kind: input, shape index: {}]
  %s1 = inlined_call_operand.hbm [shape: bf16[128,128], index: 1, kind: input, shape index: {}]
  %s2 = inlined_call_operand.hbm [shape: f32[512,128], index: 2, kind: output, shape index: {}]
  %s3 = sld [smem:[#allocation0]]
  $region49: #{tpu_custom_call.1} parent=0
    _
  %s5 = ssub.s32 1, %s3
  %s6 = scalar_select 0, %s5, %s3
  $region1: #{tpu_custom_call.1} parent=0
    #allocation2 [shape = 'u8[131072]{0}', space=vmem, size = 0x20000, scoped, tag = 'input window, operand 0']
    #allocation3 [shape = 's32[2]{0}', space=sflag, size = 0x8, scoped, tag = 'scoped memory for tpu_custom_call.1']
    #allocation4 [shape = 's32[2]{0}', space=sflag, size = 0x8, scoped, tag = 'scoped memory for tpu_custom_call.1']
    #allocation5 [shape = 'u8[32768]{0}', space=vmem, size = 0x8000, scoped, tag = 'input window, operand 1, single buffered']
    #allocation6 [shape = 's32[1]{0}', space=sflag, size = 0x4, scoped, tag = 'scoped memory for tpu_custom_call.1']
    #allocation7 [shape = 'u8[262144]{0}', space=vmem, size = 0x40000, scoped, tag = 'output window, operand 0']
    %7 = vsyncpa [#allocation3], 0
    %s8 = scalar_lea.sflag [#allocation3], 1
    %9 = vsyncpa %s8, 0
    %10 = vsyncpa [#allocation6], 0
    %11 = vsyncpa [#allocation4], 0
    %s12 = scalar_lea.sflag [#allocation4], 1
    %13 = vsyncpa %s12, 0
    loop: start=0, step=1, limit=4
    $region2: #{tpu_custom_call.1} parent=1 // loop_pre_header
      _
    $region3: #{tpu_custom_call.1} parent=1 // loop_header
      %s15 = sphi 0, %s19
      %p16 = scmp.ge.s32.totalorder %s15, 4
      %s25 = sphi 0, %s27
      %s28 = sphi 0, %s25
      %s29 = sphi 0, %s28
      %s45 = sphi 0, %s29
      %s49 = sphi 0, %s49
      %s51 = sphi 0, %s49
      %s52 = sphi 0, %s51
      %s66 = sphi 0, %s52
      %s72 = sphi 0, %s74
      %s75 = sphi 0, %s72
      %s76 = sphi 0, %s75
      %s92 = sphi 0, %s76
    $region4: #{tpu_custom_call.1} parent=1 // loop_header_branch
      %18 = sbr.rel (%p16) target = $region8
    $region5: #{tpu_custom_call.1} parent=1 // loop_body
      %s20 = ssub.s32 %s15, 1
      %s21 = ssub.s32 %s15, 2
      %s22 = sadd.s32 %s15, 1
      %s23 = ssub.s32 %s15, %s22
      %p24 = scmp.eq.s32.totalorder %s23, 0
      %s26 = sadd.s32 %s25, 1
      %s27 = scalar_select %p24, %s25, %s26
      %p30 = pneg %p24
      %p31 = scmp.eq.s32.totalorder %s15, 1
      %p32 = por %p30, %p31
      %p33 = scmp.ne.s32.totalorder %s25, %s28
      %p34 = scmp.eq.s32.totalorder %s15, 0
      %p35 = por %p33, %p34
      %p36 = scmp.ne.s32.totalorder %s25, %s28
      %p37 = scmp.eq.s32.totalorder %s20, 1
      %p38 = por %p36, %p37
      %p39 = scmp.ne.s32.totalorder %s28, %s29
      %p40 = scmp.eq.s32.totalorder %s20, 0
      %p41 = por %p39, %p40
      %p42 = scmp.ne.s32.totalorder %s28, %s29
      %p43 = scmp.eq.s32.totalorder %s21, 1
      %p44 = por %p42, %p43
      %p46 = scmp.ne.s32.totalorder %s29, %s45
      %p47 = scmp.eq.s32.totalorder %s21, 0
      %p48 = por %p46, %p47
      %s50 = sadd.s32 %s49, 1
      %p53 = scmp.eq.s32.totalorder %s15, 1
      %p54 = scmp.ne.s32.totalorder %s49, %s51
      %p55 = scmp.eq.s32.totalorder %s15, 0
      %p56 = por %p54, %p55
      %p57 = scmp.ne.s32.totalorder %s49, %s51
      %p58 = scmp.eq.s32.totalorder %s20, 1
      %p59 = por %p57, %p58
      %p60 = scmp.ne.s32.totalorder %s51, %s52
      %p61 = scmp.eq.s32.totalorder %s20, 0
      %p62 = por %p60, %p61
      %p63 = scmp.ne.s32.totalorder %s51, %s52
      %p64 = scmp.eq.s32.totalorder %s21, 1
      %p65 = por %p63, %p64
      %p67 = scmp.ne.s32.totalorder %s52, %s66
      %p68 = scmp.eq.s32.totalorder %s21, 0
      %p69 = por %p67, %p68
      %s70 = ssub.s32 %s15, %s22
      %p71 = scmp.eq.s32.totalorder %s70, 0
      %s73 = sadd.s32 %s72, 1
      %s74 = scalar_select %p71, %s72, %s73
      %p77 = pneg %p71
      %p78 = scmp.eq.s32.totalorder %s15, 1
      %p79 = por %p77, %p78
      %p80 = scmp.ne.s32.totalorder %s72, %s75
      %p81 = scmp.eq.s32.totalorder %s15, 0
      %p82 = por %p80, %p81
      %p83 = scmp.ne.s32.totalorder %s72, %s75
      %p84 = scmp.eq.s32.totalorder %s20, 1
      %p85 = por %p83, %p84
      %p86 = scmp.ne.s32.totalorder %s75, %s76
      %p87 = scmp.eq.s32.totalorder %s20, 0
      %p88 = por %p86, %p87
      %p89 = scmp.ne.s32.totalorder %s75, %s76
      %p90 = scmp.eq.s32.totalorder %s21, 1
      %p91 = por %p89, %p90
      %p93 = scmp.ne.s32.totalorder %s76, %s92
      %p94 = scmp.eq.s32.totalorder %s21, 0
      %p95 = por %p93, %p94
      %p96 = scmp.le.s32.totalorder 1, %s15
      %p97 = scmp.lt.s32.totalorder %s15, 3
      %p98 = pnand %p96, %p97
      %p99 = pneg %p98
      // Predicated region
      $region9: #{tpu_custom_call.1} parent=5 // pred_check
        _
      $region10: #{tpu_custom_call.1} parent=5 // pred_check_branch
        %101 = sbr.rel (%p98) target = $region12
      $region11: #{tpu_custom_call.1} parent=5 // pred_region
        %s102 = ssub.s32 %s15, 1
        // Predicated region
        $region13: #{tpu_custom_call.1} parent=11 // pred_check
          %p103 = pneg %p62
        $region14: #{tpu_custom_call.1} parent=11 // pred_check_branch
          %105 = sbr.rel (%p103) target = $region16
        $region15: #{tpu_custom_call.1} parent=11 // pred_region
          %s107 = ssub.s32 1024, 1024
          %108 = vsyncadd [#allocation6], %s107
          %s109 = sshll.u32 [#allocation5], 4
          %s110 = int_to_ptr.vmem [resolvable:$true] %s109
          %115 = dma.hbm_to_vmem [thread:$0]  %s1, 1024, %s110, [#allocation6], 64, 64, 4
        $region16: #{tpu_custom_call.1} parent=11 // pred_fallthru
          _
      $region12: #{tpu_custom_call.1} parent=5 // pred_fallthru
        _
      %p116 = scmp.lt.s32.totalorder %s15, 2
      // Predicated region
      $region17: #{tpu_custom_call.1} parent=5 // pred_check
        %p117 = pneg %p116
      $region18: #{tpu_custom_call.1} parent=5 // pred_check_branch
        %119 = sbr.rel (%p117) target = $region20
      $region19: #{tpu_custom_call.1} parent=5 // pred_region
        // Predicated region
        $region21: #{tpu_custom_call.1} parent=19 // pred_check
          %p120 = pneg %p35
        $region22: #{tpu_custom_call.1} parent=19 // pred_check_branch
          %122 = sbr.rel (%p120) target = $region24
        $region23: #{tpu_custom_call.1} parent=19 // pred_region
          %s123 = sand.u32 %s25, 1
          %s124 = scalar_lea.sflag [#allocation3], %s123
          %s125 = sand.u32 %s25, 1
          %s126 = smul.addr %s125, 128
          %s127 = scalar_lea.vmem [#allocation2], %s126
          %s128 = smul.u32 32, %s15
          %s130 = ssub.s32 2048, 2048
          %131 = vsyncadd %s124, %s130
          %s132 = smul.addr %s128, 64
          %s133 = scalar_lea.hbm %s0, %s132
          %s134 = sshll.u32 %s127, 4
          %s135 = int_to_ptr.vmem [resolvable:$true] %s134
          %140 = dma.hbm_to_vmem [thread:$0]  %s133, 2048, %s135, %s124, 64, 64, 4
        $region24: #{tpu_custom_call.1} parent=19 // pred_fallthru
          _
      $region20: #{tpu_custom_call.1} parent=5 // pred_fallthru
        _
      %p141 = scmp.le.s32.totalorder 1, %s15
      %p142 = scmp.lt.s32.totalorder %s15, 3
      %p143 = pnand %p141, %p142
      %p144 = pneg %p143
      // Predicated region
      $region25: #{tpu_custom_call.1} parent=5 // pred_check
        _
      $region26: #{tpu_custom_call.1} parent=5 // pred_check_branch
        %146 = sbr.rel (%p143) target = $region28
      $region27: #{tpu_custom_call.1} parent=5 // pred_region
        %s147 = ssub.s32 %s15, 1
        %s148 = sand.u32 %s28, 1
        %s149 = scalar_lea.sflag [#allocation3], %s148
        %s150 = sand.u32 %s28, 1
        %s151 = smul.addr %s150, 128
        %s152 = scalar_lea.vmem [#allocation2], %s151
        // Predicated region
        $region29: #{tpu_custom_call.1} parent=27 // pred_check
          %p153 = pneg %p41
        $region30: #{tpu_custom_call.1} parent=27 // pred_check_branch
          %155 = sbr.rel (%p153) target = $region32
        $region31: #{tpu_custom_call.1} parent=27 // pred_region
          %156 = dma.done %s149, 2048
        $region32: #{tpu_custom_call.1} parent=27 // pred_fallthru
          _
        // Predicated region
        $region33: #{tpu_custom_call.1} parent=27 // pred_check
          %p157 = pneg %p62
        $region34: #{tpu_custom_call.1} parent=27 // pred_check_branch
          %159 = sbr.rel (%p157) target = $region36
        $region35: #{tpu_custom_call.1} parent=27 // pred_region
          %160 = dma.done [#allocation6], 1024
        $region36: #{tpu_custom_call.1} parent=27 // pred_fallthru
          _
        %s161 = sand.u32 %s28, 1
        %s162 = scalar_lea.sflag [#allocation3], %s161
        %s163 = sand.u32 %s28, 1
        %s164 = smul.addr %s163, 128
        %s165 = scalar_lea.vmem [#allocation2], %s164
        %p166 = pneg %p41
        %p167 = pneg %p38
        %p168 = pneg %p62
        %p169 = pneg %p59
        %p170 = pneg %p88
        %p171 = pneg %p85
        %s172 = sand.u32 %s75, 1
        %s173 = scalar_lea.sflag [#allocation4], %s172
        %s174 = sand.u32 %s75, 1
        %s175 = smul.addr %s174, 256
        %s176 = scalar_lea.vmem [#allocation7], %s175
        %s177 = smul.u32 32, %s20
        %s178 = smul.u32 32, %s20
        %v180 = vld [vmem:[%s152] sm:$0xf]
        %v181 = vld [vmem:[%s152 + $0x4] sm:$0xf]
        %v182 = vld [vmem:[%s152 + $0x8] sm:$0xf]
        %v183 = vld [vmem:[%s152 + $0xc] sm:$0xf]
        %v184 = vld [vmem:[%s152 + $0x10] sm:$0xf]
        %v185 = vld [vmem:[%s152 + $0x14] sm:$0xf]
        %v186 = vld [vmem:[%s152 + $0x18] sm:$0xf]
        %v187 = vld [vmem:[%s152 + $0x1c] sm:$0xf]
        %v188 = vld [vmem:[%s152 + $0x20] sm:$0xf]
        %v189 = vld [vmem:[%s152 + $0x24] sm:$0xf]
        %v190 = vld [vmem:[%s152 + $0x28] sm:$0xf]
        %v191 = vld [vmem:[%s152 + $0x2c] sm:$0xf]
        %v192 = vld [vmem:[%s152 + $0x30] sm:$0xf]
        %v193 = vld [vmem:[%s152 + $0x34] sm:$0xf]
        %v194 = vld [vmem:[%s152 + $0x38] sm:$0xf]
        %v195 = vld [vmem:[%s152 + $0x3c] sm:$0xf]
        %v196 = vld [vmem:[%s152 + $0x40] sm:$0xf]
        %v197 = vld [vmem:[%s152 + $0x44] sm:$0xf]
        %v198 = vld [vmem:[%s152 + $0x48] sm:$0xf]
        %v199 = vld [vmem:[%s152 + $0x4c] sm:$0xf]
        %v200 = vld [vmem:[%s152 + $0x50] sm:$0xf]
        %v201 = vld [vmem:[%s152 + $0x54] sm:$0xf]
        %v202 = vld [vmem:[%s152 + $0x58] sm:$0xf]
        %v203 = vld [vmem:[%s152 + $0x5c] sm:$0xf]
        %v204 = vld [vmem:[%s152 + $0x60] sm:$0xf]
        %v205 = vld [vmem:[%s152 + $0x64] sm:$0xf]
        %v206 = vld [vmem:[%s152 + $0x68] sm:$0xf]
        %v207 = vld [vmem:[%s152 + $0x6c] sm:$0xf]
        %v208 = vld [vmem:[%s152 + $0x70] sm:$0xf]
        %v209 = vld [vmem:[%s152 + $0x74] sm:$0xf]
        %v210 = vld [vmem:[%s152 + $0x78] sm:$0xf]
        %v211 = vld [vmem:[%s152 + $0x7c] sm:$0xf]
        %v212 = vld [vmem:[#allocation5] sm:$0xf]
        %v213 = vld [vmem:[#allocation5 + $0x4] sm:$0xf]
        %v214 = vld [vmem:[#allocation5 + $0x8] sm:$0xf]
        %v215 = vld [vmem:[#allocation5 + $0xc] sm:$0xf]
        %v216 = vld [vmem:[#allocation5 + $0x10] sm:$0xf]
        %v217 = vld [vmem:[#allocation5 + $0x14] sm:$0xf]
        %v218 = vld [vmem:[#allocation5 + $0x18] sm:$0xf]
        %v219 = vld [vmem:[#allocation5 + $0x1c] sm:$0xf]
        %v220 = vld [vmem:[#allocation5 + $0x20] sm:$0xf]
        %v221 = vld [vmem:[#allocation5 + $0x24] sm:$0xf]
        %v222 = vld [vmem:[#allocation5 + $0x28] sm:$0xf]
        %v223 = vld [vmem:[#allocation5 + $0x2c] sm:$0xf]
        %v224 = vld [vmem:[#allocation5 + $0x30] sm:$0xf]
        %v225 = vld [vmem:[#allocation5 + $0x34] sm:$0xf]
        %v226 = vld [vmem:[#allocation5 + $0x38] sm:$0xf]
        %v227 = vld [vmem:[#allocation5 + $0x3c] sm:$0xf]
        %v228 = vunpack.c.l.bf16 %v180
        %v229 = vunpack.c.l.bf16 %v181
        %v230 = vunpack.c.l.bf16 %v182
        %v231 = vunpack.c.l.bf16 %v183
        %v232 = vunpack.c.l.bf16 %v184
        %v233 = vunpack.c.l.bf16 %v185
        %v234 = vunpack.c.l.bf16 %v186
        %v235 = vunpack.c.l.bf16 %v187
        %v236 = vunpack.c.l.bf16 %v188
        %v237 = vunpack.c.l.bf16 %v189
        %v238 = vunpack.c.l.bf16 %v190
        %v239 = vunpack.c.l.bf16 %v191
        %v240 = vunpack.c.l.bf16 %v192
        %v241 = vunpack.c.l.bf16 %v193
        %v242 = vunpack.c.l.bf16 %v194
        %v243 = vunpack.c.l.bf16 %v195
        %v244 = vunpack.c.l.bf16 %v196
        %v245 = vunpack.c.l.bf16 %v197
        %v246 = vunpack.c.l.bf16 %v198
        %v247 = vunpack.c.l.bf16 %v199
        %v248 = vunpack.c.l.bf16 %v200
        %v249 = vunpack.c.l.bf16 %v201
        %v250 = vunpack.c.l.bf16 %v202
        %v251 = vunpack.c.l.bf16 %v203
        %v252 = vunpack.c.l.bf16 %v204
        %v253 = vunpack.c.l.bf16 %v205
        %v254 = vunpack.c.l.bf16 %v206
        %v255 = vunpack.c.l.bf16 %v207
        %v256 = vunpack.c.l.bf16 %v208
        %v257 = vunpack.c.l.bf16 %v209
        %v258 = vunpack.c.l.bf16 %v210
        %v259 = vunpack.c.l.bf16 %v211
        %v292 = vunpack.c.l.b16 %v180
        %v293 = vunpack.c.l.b16 %v181
        %v294 = vunpack.c.l.b16 %v182
        %v295 = vunpack.c.l.b16 %v183
        %v296 = vunpack.c.l.b16 %v184
        %v297 = vunpack.c.l.b16 %v185
        %v298 = vunpack.c.l.b16 %v186
        %v299 = vunpack.c.l.b16 %v187
        %v300 = vunpack.c.l.b16 %v188
        %v301 = vunpack.c.l.b16 %v189
        %v302 = vunpack.c.l.b16 %v190
        %v303 = vunpack.c.l.b16 %v191
        %v304 = vunpack.c.l.b16 %v192
        %v305 = vunpack.c.l.b16 %v193
        %v306 = vunpack.c.l.b16 %v194
        %v307 = vunpack.c.l.b16 %v195
        %v308 = vunpack.c.l.b16 %v196
        %v309 = vunpack.c.l.b16 %v197
        %v310 = vunpack.c.l.b16 %v198
        %v311 = vunpack.c.l.b16 %v199
        %v312 = vunpack.c.l.b16 %v200
        %v313 = vunpack.c.l.b16 %v201
        %v314 = vunpack.c.l.b16 %v202
        %v315 = vunpack.c.l.b16 %v203
        %v316 = vunpack.c.l.b16 %v204
        %v317 = vunpack.c.l.b16 %v205
        %v318 = vunpack.c.l.b16 %v206
        %v319 = vunpack.c.l.b16 %v207
        %v320 = vunpack.c.l.b16 %v208
        %v321 = vunpack.c.l.b16 %v209
        %v322 = vunpack.c.l.b16 %v210
        %v323 = vunpack.c.l.b16 %v211
        %v324 = vpack.c.b16 %v293, %v292
        %v325 = vpack.c.b16 %v295, %v294
        %v326 = vpack.c.b16 %v297, %v296
        %v327 = vpack.c.b16 %v299, %v298
        %v328 = vpack.c.b16 %v301, %v300
        %v329 = vpack.c.b16 %v303, %v302
        %v330 = vpack.c.b16 %v305, %v304
        %v331 = vpack.c.b16 %v307, %v306
        %v332 = vpack.c.b16 %v309, %v308
        %v333 = vpack.c.b16 %v311, %v310
        %v334 = vpack.c.b16 %v313, %v312
        %v335 = vpack.c.b16 %v315, %v314
        %v336 = vpack.c.b16 %v317, %v316
        %v337 = vpack.c.b16 %v319, %v318
        %v338 = vpack.c.b16 %v321, %v320
        %v339 = vpack.c.b16 %v323, %v322
        %v372 = vunpack.c.l.b16 %v212
        %v373 = vunpack.c.l.b16 %v213
        %v374 = vunpack.c.l.b16 %v214
        %v375 = vunpack.c.l.b16 %v215
        %v376 = vunpack.c.l.b16 %v216
        %v377 = vunpack.c.l.b16 %v217
        %v378 = vunpack.c.l.b16 %v218
        %v379 = vunpack.c.l.b16 %v219
        %v380 = vunpack.c.l.b16 %v220
        %v381 = vunpack.c.l.b16 %v221
        %v382 = vunpack.c.l.b16 %v222
        %v383 = vunpack.c.l.b16 %v223
        %v384 = vunpack.c.l.b16 %v224
        %v385 = vunpack.c.l.b16 %v225
        %v386 = vunpack.c.l.b16 %v226
        %v387 = vunpack.c.l.b16 %v227
        %v388 = vpack.c.b16 %v373, %v372
        %v389 = vpack.c.b16 %v375, %v374
        %v390 = vpack.c.b16 %v377, %v376
        %v391 = vpack.c.b16 %v379, %v378
        %v392 = vpack.c.b16 %v381, %v380
        %v393 = vpack.c.b16 %v383, %v382
        %v394 = vpack.c.b16 %v385, %v384
        %v395 = vpack.c.b16 %v387, %v386
        %404 = vmatprep.subr.bf16.mxu0 0
        %405 = vmatpush1.bf16.msra.mxu0 %v388
        %406 = vmatprep.subr.bf16.mxu0 0
        %407 = vmatpush1.bf16.msra.mxu0 %v389
        %408 = vmatprep.subr.bf16.mxu0 0
        %409 = vmatpush1.bf16.msra.mxu0 %v390
        %410 = vmatprep.subr.bf16.mxu0 0
        %411 = vmatpush1.bf16.msra.mxu0 %v391
        %412 = vmatprep.subr.bf16.mxu0 0
        %413 = vmatpush1.bf16.msra.mxu0 %v392
        %414 = vmatprep.subr.bf16.mxu0 0
        %415 = vmatpush1.bf16.msra.mxu0 %v393
        %416 = vmatprep.subr.bf16.mxu0 0
        %417 = vmatpush1.bf16.msra.mxu0 %v394
        %418 = vmatprep.subr.bf16.mxu0 0
        %419 = vmatpush1.bf16.msra.mxu0 %v395
        %420 = vmatprep.subr.bf16.mxu0 0
        %421 = vmatpush1.bf16.msra.mxu0 0
        %422 = vmatprep.subr.bf16.mxu0 0
        %423 = vmatpush1.bf16.msra.mxu0 0
        %424 = vmatprep.subr.bf16.mxu0 0
        %425 = vmatpush1.bf16.msra.mxu0 0
        %426 = vmatprep.subr.bf16.mxu0 0
        %427 = vmatpush1.bf16.msra.mxu0 0
        %428 = vmatprep.subr.bf16.mxu0 0
        %429 = vmatpush1.bf16.msra.mxu0 0
        %430 = vmatprep.subr.bf16.mxu0 0
        %431 = vmatpush1.bf16.msra.mxu0 0
        %432 = vmatprep.subr.bf16.mxu0 0
        %433 = vmatpush1.bf16.msra.mxu0 0
        %434 = vmatprep.subr.bf16.mxu0 0
        %435 = vmatpush1.bf16.msra.mxu0 0
        %436 = vmatprep.mubr.bf16.mxu0 0
        %437 = vmatmul.mubr.bf16.gmra.mrb[0].mxu0 %v324
        %v438 = vpop.f32.mrb[0].mxu0
        %v439 = vadd.f32 %v228, %v438
        %v440 = vpop.f32.mrb[0].mxu0
        %v441 = vpop.f32.mrb[0].mxu0
        %v442 = vadd.f32 %v229, %v441
        %v443 = vpop.f32.mrb[0].mxu0
        %444 = vmatprep.mubr.bf16.mxu0 0
        %445 = vmatmul.mubr.bf16.gmra.mrb[0].mxu0 %v325
        %v446 = vpop.f32.mrb[0].mxu0
        %v447 = vadd.f32 %v230, %v446
        %v448 = vpop.f32.mrb[0].mxu0
        %v449 = vpop.f32.mrb[0].mxu0
        %v450 = vadd.f32 %v231, %v449
        %v451 = vpop.f32.mrb[0].mxu0
        %452 = vmatprep.mubr.bf16.mxu0 0
        %453 = vmatmul.mubr.bf16.gmra.mrb[0].mxu0 %v326
        %v454 = vpop.f32.mrb[0].mxu0
        %v455 = vadd.f32 %v232, %v454
        %v456 = vpop.f32.mrb[0].mxu0
        %v457 = vpop.f32.mrb[0].mxu0
        %v458 = vadd.f32 %v233, %v457
        %v459 = vpop.f32.mrb[0].mxu0
        %460 = vmatprep.mubr.bf16.mxu0 0
        %461 = vmatmul.mubr.bf16.gmra.mrb[0].mxu0 %v327
        %v462 = vpop.f32.mrb[0].mxu0
        %v463 = vadd.f32 %v234, %v462
        %v464 = vpop.f32.mrb[0].mxu0
        %v465 = vpop.f32.mrb[0].mxu0
        %v466 = vadd.f32 %v235, %v465
        %v467 = vpop.f32.mrb[0].mxu0
        %468 = vmatprep.mubr.bf16.mxu0 0
        %469 = vmatmul.mubr.bf16.gmra.mrb[0].mxu0 %v328
        %v470 = vpop.f32.mrb[0].mxu0
        %v471 = vadd.f32 %v236, %v470
        %v472 = vpop.f32.mrb[0].mxu0
        %v473 = vpop.f32.mrb[0].mxu0
        %v474 = vadd.f32 %v237, %v473
        %v475 = vpop.f32.mrb[0].mxu0
        %476 = vmatprep.mubr.bf16.mxu0 0
        %477 = vmatmul.mubr.bf16.gmra.mrb[0].mxu0 %v329
        %v478 = vpop.f32.mrb[0].mxu0
        %v479 = vadd.f32 %v238, %v478
        %v480 = vpop.f32.mrb[0].mxu0
        %v481 = vpop.f32.mrb[0].mxu0
        %v482 = vadd.f32 %v239, %v481
        %v483 = vpop.f32.mrb[0].mxu0
        %484 = vmatprep.mubr.bf16.mxu0 0
        %485 = vmatmul.mubr.bf16.gmra.mrb[0].mxu0 %v330
        %v486 = vpop.f32.mrb[0].mxu0
        %v487 = vadd.f32 %v240, %v486
        %v488 = vpop.f32.mrb[0].mxu0
        %v489 = vpop.f32.mrb[0].mxu0
        %v490 = vadd.f32 %v241, %v489
        %v491 = vpop.f32.mrb[0].mxu0
        %492 = vmatprep.mubr.bf16.mxu0 0
        %493 = vmatmul.mubr.bf16.gmra.mrb[0].mxu0 %v331
        %v494 = vpop.f32.mrb[0].mxu0
        %v495 = vadd.f32 %v242, %v494
        %v496 = vpop.f32.mrb[0].mxu0
        %v497 = vpop.f32.mrb[0].mxu0
        %v498 = vadd.f32 %v243, %v497
        %v499 = vpop.f32.mrb[0].mxu0
        %500 = vmatprep.mubr.bf16.mxu0 0
        %501 = vmatmul.mubr.bf16.gmra.mrb[0].mxu0 %v332
        %v502 = vpop.f32.mrb[0].mxu0
        %v503 = vadd.f32 %v244, %v502
        %v504 = vpop.f32.mrb[0].mxu0
        %v505 = vpop.f32.mrb[0].mxu0
        %v506 = vadd.f32 %v245, %v505
        %v507 = vpop.f32.mrb[0].mxu0
        %508 = vmatprep.mubr.bf16.mxu0 0
        %509 = vmatmul.mubr.bf16.gmra.mrb[0].mxu0 %v333
        %v510 = vpop.f32.mrb[0].mxu0
        %v511 = vadd.f32 %v246, %v510
        %v512 = vpop.f32.mrb[0].mxu0
        %v513 = vpop.f32.mrb[0].mxu0
        %v514 = vadd.f32 %v247, %v513
        %v515 = vpop.f32.mrb[0].mxu0
        %516 = vmatprep.mubr.bf16.mxu0 0
        %517 = vmatmul.mubr.bf16.gmra.mrb[0].mxu0 %v334
        %v518 = vpop.f32.mrb[0].mxu0
        %v519 = vadd.f32 %v248, %v518
        %v520 = vpop.f32.mrb[0].mxu0
        %v521 = vpop.f32.mrb[0].mxu0
        %v522 = vadd.f32 %v249, %v521
        %v523 = vpop.f32.mrb[0].mxu0
        %524 = vmatprep.mubr.bf16.mxu0 0
        %525 = vmatmul.mubr.bf16.gmra.mrb[0].mxu0 %v335
        %v526 = vpop.f32.mrb[0].mxu0
        %v527 = vadd.f32 %v250, %v526
        %v528 = vpop.f32.mrb[0].mxu0
        %v529 = vpop.f32.mrb[0].mxu0
        %v530 = vadd.f32 %v251, %v529
        %v531 = vpop.f32.mrb[0].mxu0
        %532 = vmatprep.mubr.bf16.mxu0 0
        %533 = vmatmul.mubr.bf16.gmra.mrb[0].mxu0 %v336
        %v534 = vpop.f32.mrb[0].mxu0
        %v535 = vadd.f32 %v252, %v534
        %v536 = vpop.f32.mrb[0].mxu0
        %v537 = vpop.f32.mrb[0].mxu0
        %v538 = vadd.f32 %v253, %v537
        %v539 = vpop.f32.mrb[0].mxu0
        %540 = vmatprep.mubr.bf16.mxu0 0
        %541 = vmatmul.mubr.bf16.gmra.mrb[0].mxu0 %v337
        %v542 = vpop.f32.mrb[0].mxu0
        %v543 = vadd.f32 %v254, %v542
        %v544 = vpop.f32.mrb[0].mxu0
        %v545 = vpop.f32.mrb[0].mxu0
        %v546 = vadd.f32 %v255, %v545
        %v547 = vpop.f32.mrb[0].mxu0
        %548 = vmatprep.mubr.bf16.mxu0 0
        %549 = vmatmul.mubr.bf16.gmra.mrb[0].mxu0 %v338
        %v550 = vpop.f32.mrb[0].mxu0
        %v551 = vadd.f32 %v256, %v550
        %v552 = vpop.f32.mrb[0].mxu0
        %v553 = vpop.f32.mrb[0].mxu0
        %v554 = vadd.f32 %v257, %v553
        %v555 = vpop.f32.mrb[0].mxu0
        %556 = vmatprep.mubr.bf16.mxu0 0
        %557 = vmatmul.mubr.bf16.gmra.mrb[0].mxu0 %v339
        %v558 = vpop.f32.mrb[0].mxu0
        %v559 = vadd.f32 %v258, %v558
        %v560 = vpop.f32.mrb[0].mxu0
        %v561 = vpop.f32.mrb[0].mxu0
        %v562 = vadd.f32 %v259, %v561
        %v563 = vpop.f32.mrb[0].mxu0
        %564 = vdwg.mxu0
        %565 = vst [vmem:[%s176] sm:$0xff] %v439
        %566 = vst [vmem:[%s176 + $0x8] sm:$0xff] %v442
        %567 = vst [vmem:[%s176 + $0x10] sm:$0xff] %v447
        %568 = vst [vmem:[%s176 + $0x18] sm:$0xff] %v450
        %569 = vst [vmem:[%s176 + $0x20] sm:$0xff] %v455
        %570 = vst [vmem:[%s176 + $0x28] sm:$0xff] %v458
        %571 = vst [vmem:[%s176 + $0x30] sm:$0xff] %v463
        %572 = vst [vmem:[%s176 + $0x38] sm:$0xff] %v466
        %573 = vst [vmem:[%s176 + $0x40] sm:$0xff] %v471
        %574 = vst [vmem:[%s176 + $0x48] sm:$0xff] %v474
        %575 = vst [vmem:[%s176 + $0x50] sm:$0xff] %v479
        %576 = vst [vmem:[%s176 + $0x58] sm:$0xff] %v482
        %577 = vst [vmem:[%s176 + $0x60] sm:$0xff] %v487
        %578 = vst [vmem:[%s176 + $0x68] sm:$0xff] %v490
        %579 = vst [vmem:[%s176 + $0x70] sm:$0xff] %v495
        %580 = vst [vmem:[%s176 + $0x78] sm:$0xff] %v498
        %581 = vst [vmem:[%s176 + $0x80] sm:$0xff] %v503
        %582 = vst [vmem:[%s176 + $0x88] sm:$0xff] %v506
        %583 = vst [vmem:[%s176 + $0x90] sm:$0xff] %v511
        %584 = vst [vmem:[%s176 + $0x98] sm:$0xff] %v514
        %585 = vst [vmem:[%s176 + $0xa0] sm:$0xff] %v519
        %586 = vst [vmem:[%s176 + $0xa8] sm:$0xff] %v522
        %587 = vst [vmem:[%s176 + $0xb0] sm:$0xff] %v527
        %588 = vst [vmem:[%s176 + $0xb8] sm:$0xff] %v530
        %589 = vst [vmem:[%s176 + $0xc0] sm:$0xff] %v535
        %590 = vst [vmem:[%s176 + $0xc8] sm:$0xff] %v538
        %591 = vst [vmem:[%s176 + $0xd0] sm:$0xff] %v543
        %592 = vst [vmem:[%s176 + $0xd8] sm:$0xff] %v546
        %593 = vst [vmem:[%s176 + $0xe0] sm:$0xff] %v551
        %594 = vst [vmem:[%s176 + $0xe8] sm:$0xff] %v554
        %595 = vst [vmem:[%s176 + $0xf0] sm:$0xff] %v559
        %596 = vst [vmem:[%s176 + $0xf8] sm:$0xff] %v562
        %s597 = sand.u32 %s75, 1
        %s598 = scalar_lea.sflag [#allocation4], %s597
        %s599 = sand.u32 %s75, 1
        %s600 = smul.addr %s599, 256
        %s601 = scalar_lea.vmem [#allocation7], %s600
        // Predicated region
        $region37: #{tpu_custom_call.1} parent=27 // pred_check
          %p602 = pneg %p85
        $region38: #{tpu_custom_call.1} parent=27 // pred_check_branch
          %604 = sbr.rel (%p602) target = $region40
        $region39: #{tpu_custom_call.1} parent=27 // pred_region
          %s605 = smul.u32 32, %s20
          %s607 = ssub.s32 4096, 4096
          %608 = vsyncadd %s598, %s607
          %s609 = smul.addr %s605, 128
          %s610 = scalar_lea.hbm %s2, %s609
          %s611 = sshll.u32 %s601, 4
          %s612 = int_to_ptr.vmem [resolvable:$true] %s611
          %617 = dma.vmem_to_hbm [thread:$0]  %s612, 4096, %s610, %s598, 128, 128, 8
        $region40: #{tpu_custom_call.1} parent=27 // pred_fallthru
          _
      $region28: #{tpu_custom_call.1} parent=5 // pred_fallthru
        _
      %p618 = scmp.le.s32.totalorder 2, %s15
      // Predicated region
      $region41: #{tpu_custom_call.1} parent=5 // pred_check
        %p619 = pneg %p618
      $region42: #{tpu_custom_call.1} parent=5 // pred_check_branch
        %621 = sbr.rel (%p619) target = $region44
      $region43: #{tpu_custom_call.1} parent=5 // pred_region
        %s622 = ssub.s32 %s15, 2
        // Predicated region
        $region45: #{tpu_custom_call.1} parent=43 // pred_check
          %p623 = pneg %p91
        $region46: #{tpu_custom_call.1} parent=43 // pred_check_branch
          %625 = sbr.rel (%p623) target = $region48
        $region47: #{tpu_custom_call.1} parent=43 // pred_region
          %s626 = sand.u32 %s76, 1
          %s627 = scalar_lea.sflag [#allocation4], %s626
          %s628 = sand.u32 %s76, 1
          %s629 = smul.addr %s628, 256
          %s630 = scalar_lea.vmem [#allocation7], %s629
          %631 = dma.done %s627, 4096
        $region48: #{tpu_custom_call.1} parent=43 // pred_fallthru
          _
      $region44: #{tpu_custom_call.1} parent=5 // pred_fallthru
        _
    $region6: #{tpu_custom_call.1} parent=1 // loop_footer
      %s19 = sadd.s32 1, %s15
    $region7: #{tpu_custom_call.1} parent=1 // loop_footer_branch
      %14 = sbr.rel target = $region3
    $region8: #{tpu_custom_call.1} parent=1 // loop_exit
      _
    %632 = vsyncpa [#allocation3], 1
    %s633 = scalar_lea.sflag [#allocation3], 1
    %634 = vsyncpa %s633, 1
    %635 = vsyncpa [#allocation6], 1
    %636 = vsyncpa [#allocation4], 1
    %s637 = scalar_lea.sflag [#allocation4], 1
    %638 = vsyncpa %s637, 1

</llo_original>
